<compile_context>
chip_gen: v7x
topology: tpu7x:2x2x1
jax: 0.10.0
libtpu: 0.0.40
codegen_flags: <defaults>
</compile_context>

<pallas_src>
import jax
import jax.numpy as jnp
from jax import lax
from jax.experimental import pallas as pl
from jax.experimental.pallas import tpu as pltpu


def _round_up(a, b):
    return (a + b - 1) // b * b


def _sublane_pack(dtype):
    # Sublane packing of the vreg: f32 -> 8, bf16 -> 16, int8/fp8 -> 32.
    return max(8, (32 // (jnp.dtype(dtype).itemsize * 8)) * 8)


def _vmem_limit_bytes():
    cap = 64 * 1024 * 1024  # conservative fallback = v7x physical VMEM
    try:
        info = pltpu.get_tpu_info()
        cap = int(getattr(info, "vmem_capacity_bytes", cap))
    except Exception:
        pass
    # ~100 MiB scoped on 128-MiB parts (v5e/v6e), ~36 MiB on 64-MiB v7x.
    return int(max(32 << 20, min(cap - (28 << 20), 100 << 20)))


def _pick_tile_m(M, K, Cout, in_itemsize, out_itemsize, pack, vmem_limit, tm_max):
    """Largest row tile whose double-buffered working set fits the VMEM budget."""
    budget = 0.5 * vmem_limit  # headroom for compiler scratch / pipelining
    tm = tm_max
    while tm > pack:
        need = 2 * (tm * K * in_itemsize        # patches tile (double-buffered)
                    + K * Cout * in_itemsize    # weights
                    + tm * Cout * out_itemsize  # output tile
                    + tm * Cout * 4)            # f32 accumulator headroom
        if need <= budget:
            break
        tm //= 2
    tm = max(pack, tm)
    tm = min(tm, _round_up(M, pack))            # don't tile past the problem
    return _round_up(tm, pack)
    # NOTE: for very large K on v7x, the right move is a K grid axis marked
    # "arbitrary" with an f32 VMEM accumulator instead of shrinking tm < ~512.


# ---- Pass 1: stats only.  The f32 conv accumulator never touches HBM. -------
def _conv_stats_kernel(p_ref, w_ref, stats_ref):
    acc = jnp.dot(p_ref[...], w_ref[...], preferred_element_type=jnp.float32)
    # Per-tile BN partials (zero-padded M rows contribute exactly 0).
    stats_ref[0, 0:1, :] = jnp.sum(acc, axis=0, keepdims=True)
    stats_ref[0, 1:2, :] = jnp.sum(acc * acc, axis=0, keepdims=True)


# ---- Pass 2: recompute matmul + fused folded-BN affine, single output write. -
def _conv_bn_kernel(p_ref, w_ref, scale_ref, shift_ref, o_ref):
    acc = jnp.dot(p_ref[...], w_ref[...], preferred_element_type=jnp.float32)
    o_ref[...] = (acc * scale_ref[...] + shift_ref[...]).astype(o_ref.dtype)


def basic_conv2d(x_nchw, weight_oihw, gamma, beta, *,
                 stride=1, padding=0, dilation=1, eps=1e-5, tile_m_max=2048):
    """Pallas implementation of BasicConv2d.forward (NCHW in, NCHW out)."""
    N, Cin, H, W = x_nchw.shape
    Cout, Cin_w, KH, KW = weight_oihw.shape
    assert Cin_w == Cin

    Ho = (H + 2 * padding - dilation * (KH - 1) - 1) // stride + 1
    Wo = (W + 2 * padding - dilation * (KW - 1) - 1) // stride + 1

    dt = x_nchw.dtype
    itemsize = jnp.dtype(dt).itemsize

    # ---- glue: NHWC + im2col -> one K-wide MXU matmul per tile.
    # NOTE(perf): next step is folding im2col into the kernel (shifted NHWC
    # windows over an "arbitrary" tap axis) to avoid the KH*KW-expanded
    # activation in HBM; kept in the wrapper here for robustness.
    x_nhwc = jnp.transpose(x_nchw, (0, 2, 3, 1))
    x_nhwc = jnp.pad(x_nhwc, ((0, 0), (padding, padding), (padding, padding), (0, 0)))
    taps = []
    for kh in range(KH):
        for kw in range(KW):
            h0, w0 = kh * dilation, kw * dilation
            taps.append(lax.slice(
                x_nhwc,
                (0, h0, w0, 0),
                (N, h0 + (Ho - 1) * stride + 1, w0 + (Wo - 1) * stride + 1, Cin),
                (1, stride, stride, 1)))  # (N, Ho, Wo, Cin)
    patches = jnp.stack(taps, axis=3).reshape(N * Ho * Wo, KH * KW * Cin).astype(dt)
    w_2d = (jnp.transpose(weight_oihw, (2, 3, 1, 0))
            .reshape(KH * KW * Cin, Cout).astype(dt))

    M, K = patches.shape

    vmem_limit = _vmem_limit_bytes()
    pack = _sublane_pack(dt)
    TM = _pick_tile_m(M, K, Cout, itemsize, itemsize, pack, vmem_limit, tile_m_max)
    M_pad = _round_up(M, TM)
    n_tiles = M_pad // TM
    if M_pad != M:
        patches = jnp.pad(patches, ((0, M_pad - M), (0, 0)))  # zero rows -> 0 in stats

    cparams = pltpu.CompilerParams(
        # On v7x the "parallel" M axis should shard across both TensorCores;
        # if profiling shows a core idle, switch to pltpu.CORE_PARALLEL here.
        dimension_semantics=("parallel",),
        vmem_limit_bytes=vmem_limit,
    )

    matmul_flops = 2 * M_pad * K * Cout
    matmul_bytes = M_pad * K * itemsize + K * Cout * itemsize

    # ---- Pass 1: tiled conv matmul -> per-tile BN partial statistics only ----
    stats = pl.pallas_call(
        _conv_stats_kernel,
        out_shape=jax.ShapeDtypeStruct((n_tiles, 2, Cout), jnp.float32),
        grid_spec=pltpu.PrefetchScalarGridSpec(
            num_scalar_prefetch=0,
            grid=(n_tiles,),
            in_specs=[
                pl.BlockSpec((TM, K), lambda i: (i, 0)),
                pl.BlockSpec((K, Cout), lambda i: (0, 0)),
            ],
            out_specs=pl.BlockSpec((1, 2, Cout), lambda i: (i, 0, 0)),
        ),
        compiler_params=cparams,
        cost_estimate=pl.CostEstimate(
            flops=matmul_flops + 3 * M_pad * Cout,
            transcendentals=0,
            bytes_accessed=matmul_bytes + n_tiles * 2 * Cout * 4),
    )(patches, w_2d)

    # ---- glue: tiny (2, Cout) reduce; fold BN (training mode, biased var)
    # into a per-channel scale/shift.  Stats come from f32 MXU accumulators;
    # switch to Chan-style (count, mean, M2) partials if M becomes very large.
    s = jnp.sum(stats, axis=0)                     # (2, Cout)
    mean = s[0] / M
    var = jnp.maximum(s[1] / M - mean * mean, 0.0)
    scale = (gamma.astype(jnp.float32) * lax.rsqrt(var + eps)).reshape(1, Cout)
    shift = (beta.astype(jnp.float32) - mean * scale[0]).reshape(1, Cout)

    # ---- Pass 2: recompute matmul + fused BN affine; single HBM output write -
    out2d = pl.pallas_call(
        _conv_bn_kernel,
        out_shape=jax.ShapeDtypeStruct((M_pad, Cout), dt),
        grid_spec=pltpu.PrefetchScalarGridSpec(
            num_scalar_prefetch=0,
            grid=(n_tiles,),
            in_specs=[
                pl.BlockSpec((TM, K), lambda i: (i, 0)),
                pl.BlockSpec((K, Cout), lambda i: (0, 0)),
                pl.BlockSpec((1, Cout), lambda i: (0, 0)),
                pl.BlockSpec((1, Cout), lambda i: (0, 0)),
            ],
            out_specs=pl.BlockSpec((TM, Cout), lambda i: (i, 0)),
        ),
        compiler_params=cparams,
        cost_estimate=pl.CostEstimate(
            flops=matmul_flops + 2 * M_pad * Cout,
            transcendentals=0,
            bytes_accessed=matmul_bytes + 2 * Cout * 4 + M_pad * Cout * itemsize),
    )(patches, w_2d, scale, shift)

    # ---- glue: strip M padding, back to NCHW ----
    out = out2d[:M].reshape(N, Ho, Wo, Cout)
    return jnp.transpose(out, (0, 3, 1, 2))


def _reference(x_nchw, weight_oihw, gamma, beta, *, stride, padding, dilation, eps):
    conv = lax.conv_general_dilated(
        x_nchw, weight_oihw,
        window_strides=(stride, stride),
        padding=((padding, padding), (padding, padding)),
        rhs_dilation=(dilation, dilation),
        dimension_numbers=("NCHW", "OIHW", "NCHW"),
    )
    mean = conv.mean(axis=(0, 2, 3), keepdims=True)
    var = ((conv - mean) ** 2).mean(axis=(0, 2, 3), keepdims=True)
    return ((conv - mean) / jnp.sqrt(var + eps)) * gamma.reshape(1, -1, 1, 1) \
        + beta.reshape(1, -1, 1, 1)


if __name__ == "__main__":
    # Module config: BasicConv2d(in_planes=4, out_planes=8, kernel_size=3, padding=1)
    N, Cin, H, W = 2, 4, 16, 16
    Cout, KH, KW = 8, 3, 3
    stride, padding, dilation, eps = 1, 1, 1, 1e-5

    key = jax.random.PRNGKey(0)
    kx, kw_, kg, kb = jax.random.split(key, 4)
    x = jax.random.normal(kx, (N, Cin, H, W), dtype=jnp.float32)
    weight = 0.1 * jax.random.normal(kw_, (Cout, Cin, KH, KW), dtype=jnp.float32)
    gamma = 1.0 + 0.1 * jax.random.normal(kg, (Cout,), dtype=jnp.float32)
    beta = 0.1 * jax.random.normal(kb, (Cout,), dtype=jnp.float32)

    out = basic_conv2d(x, weight, gamma, beta,
                       stride=stride, padding=padding, dilation=dilation, eps=eps)
    out = jax.block_until_ready(out)

    ref = _reference(x, weight, gamma, beta,
                     stride=stride, padding=padding, dilation=dilation, eps=eps)
    assert out.shape == (N, Cout, H, W)
    assert jnp.allclose(out, ref, atol=1e-4, rtol=1e-4), \
        f"max abs err {jnp.max(jnp.abs(out - ref))}"
    print("KERNEL_OK")
</pallas_src>

<mosaic_0001>
module attributes {stable_mosaic.version = 11 : i64} {
  func.func @_conv_stats_kernel(%arg0: i32, %arg1: memref<512x36xf32, #tpu.memory_space<vmem>>, %arg2: memref<36x8xf32, #tpu.memory_space<vmem>>, %arg3: memref<1x2x8xf32, #tpu.memory_space<vmem>>) attributes {dimension_semantics = [#tpu.dimension_semantics<parallel>], iteration_bounds = array<i64: 1>, scalar_prefetch = 0 : i64, scratch_operands = 0 : i64, tpu.core_type = #tpu.core_type<tc>, window_params = [{transform_indices = @transform_0, window_bounds = array<i64: 512, 36>}, {pipeline_mode = #tpu.pipeline_mode<synchronous>, transform_indices = @transform_1, window_bounds = array<i64: 36, 8>}, {transform_indices = @transform_2, window_bounds = array<i64: 1, 2, 8>}]} {
    %c0 = arith.constant 0 : index
    %c0_0 = arith.constant 0 : index
    %0 = vector.load %arg1[%c0, %c0_0] : memref<512x36xf32, #tpu.memory_space<vmem>>, vector<512x36xf32>
    %c0_1 = arith.constant 0 : index
    %c0_2 = arith.constant 0 : index
    %1 = vector.load %arg2[%c0_1, %c0_2] : memref<36x8xf32, #tpu.memory_space<vmem>>, vector<36x8xf32>
    %cst = arith.constant dense<0.000000e+00> : vector<512x8xf32>
    %2 = tpu.matmul %0, %1, %cst {dimension_numbers = #tpu.dot_dimension_numbers<[1], [0], [0], [1], [0, 0, 1, 1], [], []>} : vector<512x36xf32>, vector<36x8xf32>, vector<512x8xf32> -> vector<512x8xf32>
    %cst_3 = arith.constant dense<0.000000e+00> : vector<8xf32>
    %3 = vector.multi_reduction <add>, %2, %cst_3 [0] : vector<512x8xf32> to vector<8xf32>
    %4 = vector.shape_cast %3 : vector<8xf32> to vector<1x8xf32>
    %c0_4 = arith.constant 0 : index
    %c0_5 = arith.constant 0 : index
    %c0_6 = arith.constant 0 : index
    %5 = vector.load %arg3[%c0_4, %c0_5, %c0_6] : memref<1x2x8xf32, #tpu.memory_space<vmem>>, vector<1x1x8xf32>
    %6 = vector.shape_cast %5 : vector<1x1x8xf32> to vector<1x8xf32>
    %7 = vector.shape_cast %4 : vector<1x8xf32> to vector<1x1x8xf32>
    tpu.vector_store %arg3[%c0_4, %c0_5, %c0_6], %7 {strides = array<i32>} : memref<1x2x8xf32, #tpu.memory_space<vmem>>, vector<1x1x8xf32>,
    %8 = arith.mulf %2, %2 : vector<512x8xf32>
    %cst_7 = arith.constant dense<0.000000e+00> : vector<8xf32>
    %9 = vector.multi_reduction <add>, %8, %cst_7 [0] : vector<512x8xf32> to vector<8xf32>
    %10 = vector.shape_cast %9 : vector<8xf32> to vector<1x8xf32>
    %c0_8 = arith.constant 0 : index
    %c1 = arith.constant 1 : index
    %c0_9 = arith.constant 0 : index
    %11 = vector.load %arg3[%c0_8, %c1, %c0_9] : memref<1x2x8xf32, #tpu.memory_space<vmem>>, vector<1x1x8xf32>
    %12 = vector.shape_cast %11 : vector<1x1x8xf32> to vector<1x8xf32>
    %13 = vector.shape_cast %10 : vector<1x8xf32> to vector<1x1x8xf32>
    tpu.vector_store %arg3[%c0_8, %c1, %c0_9], %13 {strides = array<i32>} : memref<1x2x8xf32, #tpu.memory_space<vmem>>, vector<1x1x8xf32>,
    return
  }
  func.func @transform_0(%arg0: i32) -> (i32, i32) {
    %c0_i32 = arith.constant 0 : i32
    %c0_i32_0 = arith.constant 0 : i32
    return %arg0, %c0_i32 : i32, i32
  }
  func.func @transform_1(%arg0: i32) -> (i32, i32) {
    %c0_i32 = arith.constant 0 : i32
    %c0_i32_0 = arith.constant 0 : i32
    %c0_i32_1 = arith.constant 0 : i32
    return %c0_i32, %c0_i32_0 : i32, i32
  }
  func.func @transform_2(%arg0: i32) -> (i32, i32, i32) {
    %c0_i32 = arith.constant 0 : i32
    %c0_i32_0 = arith.constant 0 : i32
    %c0_i32_1 = arith.constant 0 : i32
    return %arg0, %c0_i32, %c0_i32_0 : i32, i32, i32
  }
}

</mosaic_0001>

<llo_original>
// kernel: tpu_custom_call.1
$region0: #{tpu_custom_call.1}
  #allocation0 [shape = 'u32[]', space=smem, size = 0x4, offset = 0x4, fixed_abs, tag = 'smem constant byte address 0x4 - core index']
  #allocation1 [shape = 'u32[144,128]{1,0:T(1,128)}', space=vmem, size = 0x12000, scoped, tag = 'internal scratch']
  %s0 = inlined_call_operand.vmem [shape: f32[512,36], index: 0, kind: input, shape index: {}]
  %s1 = inlined_call_operand.vmem [shape: f32[36,8], index: 1, kind: input, shape index: {}]
  %s2 = inlined_call_operand.hbm [shape: f32[1,2,8], index: 2, kind: output, shape index: {}]
  %s3 = sld [smem:[#allocation0]]
  $region18: #{tpu_custom_call.1} parent=0
    _
  %s5 = ssub.s32 1, %s3
  %s6 = scalar_select 0, %s5, %s3
  $region1: #{tpu_custom_call.1} parent=0
    #allocation2 [shape = 'u8[1024]{0}', space=vmem, size = 0x400, scoped, tag = 'output window, operand 0, single buffered']
    #allocation3 [shape = 's32[1]{0}', space=sflag, size = 0x4, scoped, tag = 'scoped memory for tpu_custom_call.1']
    %7 = vsyncpa [#allocation3], 0
    // Predicated region
    $region2: #{tpu_custom_call.1} parent=1 // pred_check
      _
    $region3: #{tpu_custom_call.1} parent=1 // pred_check_branch
      %9 = sbr.rel (0) target = $region5
    $region4: #{tpu_custom_call.1} parent=1 // pred_region
      _
    $region5: #{tpu_custom_call.1} parent=1 // pred_fallthru
      _
    // Predicated region
    $region6: #{tpu_custom_call.1} parent=1 // pred_check
      _
    $region7: #{tpu_custom_call.1} parent=1 // pred_check_branch
      %11 = sbr.rel (0) target = $region9
    $region8: #{tpu_custom_call.1} parent=1 // pred_region
      _
    $region9: #{tpu_custom_call.1} parent=1 // pred_fallthru
      _
    %v12 = vld [vmem:[%s0] sm:$0xff]
    %v13 = vld [vmem:[%s0 + $0x8] sm:$0xff]
    %v14 = vld [vmem:[%s0 + $0x10] sm:$0xff]
    %v15 = vld [vmem:[%s0 + $0x18] sm:$0xff]
    %v16 = vld [vmem:[%s0 + $0x20] sm:$0xff]
    %v17 = vld [vmem:[%s0 + $0x28] sm:$0xff]
    %v18 = vld [vmem:[%s0 + $0x30] sm:$0xff]
    %v19 = vld [vmem:[%s0 + $0x38] sm:$0xff]
    %v20 = vld [vmem:[%s0 + $0x40] sm:$0xff]
    %v21 = vld [vmem:[%s0 + $0x48] sm:$0xff]
    %v22 = vld [vmem:[%s0 + $0x50] sm:$0xff]
    %v23 = vld [vmem:[%s0 + $0x58] sm:$0xff]
    %v24 = vld [vmem:[%s0 + $0x60] sm:$0xff]
    %v25 = vld [vmem:[%s0 + $0x68] sm:$0xff]
    %v26 = vld [vmem:[%s0 + $0x70] sm:$0xff]
    %v27 = vld [vmem:[%s0 + $0x78] sm:$0xff]
    %v28 = vld [vmem:[%s0 + $0x80] sm:$0xff]
    %v29 = vld [vmem:[%s0 + $0x88] sm:$0xff]
    %v30 = vld [vmem:[%s0 + $0x90] sm:$0xff]
    %v31 = vld [vmem:[%s0 + $0x98] sm:$0xff]
    %v32 = vld [vmem:[%s0 + $0xa0] sm:$0xff]
    %v33 = vld [vmem:[%s0 + $0xa8] sm:$0xff]
    %v34 = vld [vmem:[%s0 + $0xb0] sm:$0xff]
    %v35 = vld [vmem:[%s0 + $0xb8] sm:$0xff]
    %v36 = vld [vmem:[%s0 + $0xc0] sm:$0xff]
    %v37 = vld [vmem:[%s0 + $0xc8] sm:$0xff]
    %v38 = vld [vmem:[%s0 + $0xd0] sm:$0xff]
    %v39 = vld [vmem:[%s0 + $0xd8] sm:$0xff]
    %v40 = vld [vmem:[%s0 + $0xe0] sm:$0xff]
    %v41 = vld [vmem:[%s0 + $0xe8] sm:$0xff]
    %v42 = vld [vmem:[%s0 + $0xf0] sm:$0xff]
    %v43 = vld [vmem:[%s0 + $0xf8] sm:$0xff]
    %v44 = vld [vmem:[%s0 + $0x100] sm:$0xff]
    %v45 = vld [vmem:[%s0 + $0x108] sm:$0xff]
    %v46 = vld [vmem:[%s0 + $0x110] sm:$0xff]
    %v47 = vld [vmem:[%s0 + $0x118] sm:$0xff]
    %v48 = vld [vmem:[%s0 + $0x120] sm:$0xff]
    %v49 = vld [vmem:[%s0 + $0x128] sm:$0xff]
    %v50 = vld [vmem:[%s0 + $0x130] sm:$0xff]
    %v51 = vld [vmem:[%s0 + $0x138] sm:$0xff]
    %v52 = vld [vmem:[%s0 + $0x140] sm:$0xff]
    %v53 = vld [vmem:[%s0 + $0x148] sm:$0xff]
    %v54 = vld [vmem:[%s0 + $0x150] sm:$0xff]
    %v55 = vld [vmem:[%s0 + $0x158] sm:$0xff]
    %v56 = vld [vmem:[%s0 + $0x160] sm:$0xff]
    %v57 = vld [vmem:[%s0 + $0x168] sm:$0xff]
    %v58 = vld [vmem:[%s0 + $0x170] sm:$0xff]
    %v59 = vld [vmem:[%s0 + $0x178] sm:$0xff]
    %v60 = vld [vmem:[%s0 + $0x180] sm:$0xff]
    %v61 = vld [vmem:[%s0 + $0x188] sm:$0xff]
    %v62 = vld [vmem:[%s0 + $0x190] sm:$0xff]
    %v63 = vld [vmem:[%s0 + $0x198] sm:$0xff]
    %v64 = vld [vmem:[%s0 + $0x1a0] sm:$0xff]
    %v65 = vld [vmem:[%s0 + $0x1a8] sm:$0xff]
    %v66 = vld [vmem:[%s0 + $0x1b0] sm:$0xff]
    %v67 = vld [vmem:[%s0 + $0x1b8] sm:$0xff]
    %v68 = vld [vmem:[%s0 + $0x1c0] sm:$0xff]
    %v69 = vld [vmem:[%s0 + $0x1c8] sm:$0xff]
    %v70 = vld [vmem:[%s0 + $0x1d0] sm:$0xff]
    %v71 = vld [vmem:[%s0 + $0x1d8] sm:$0xff]
    %v72 = vld [vmem:[%s0 + $0x1e0] sm:$0xff]
    %v73 = vld [vmem:[%s0 + $0x1e8] sm:$0xff]
    %v74 = vld [vmem:[%s0 + $0x1f0] sm:$0xff]
    %v75 = vld [vmem:[%s0 + $0x1f8] sm:$0xff]
    %v76 = vld [vmem:[%s1] sm:$0xff]
    %v77 = vld [vmem:[%s1 + $0x8] sm:$0xff]
    %v78 = vld [vmem:[%s1 + $0x10] sm:$0xff]
    %v79 = vld [vmem:[%s1 + $0x18] sm:$0xff]
    %v80 = vld [vmem:[%s1 + $0x20] sm:$0xf]
    %vm81 = vcmask 293888
    %v83 = vsel %vm81, %v12, 0
    %v86 = vsel %vm81, %v13, 0
    %v89 = vsel %vm81, %v14, 0
    %v92 = vsel %vm81, %v15, 0
    %v95 = vsel %vm81, %v16, 0
    %v98 = vsel %vm81, %v17, 0
    %v101 = vsel %vm81, %v18, 0
    %v104 = vsel %vm81, %v19, 0
    %v107 = vsel %vm81, %v20, 0
    %v110 = vsel %vm81, %v21, 0
    %v113 = vsel %vm81, %v22, 0
    %v116 = vsel %vm81, %v23, 0
    %v119 = vsel %vm81, %v24, 0
    %v122 = vsel %vm81, %v25, 0
    %v125 = vsel %vm81, %v26, 0
    %v128 = vsel %vm81, %v27, 0
    %v131 = vsel %vm81, %v28, 0
    %v134 = vsel %vm81, %v29, 0
    %v137 = vsel %vm81, %v30, 0
    %v140 = vsel %vm81, %v31, 0
    %v143 = vsel %vm81, %v32, 0
    %v146 = vsel %vm81, %v33, 0
    %v149 = vsel %vm81, %v34, 0
    %v152 = vsel %vm81, %v35, 0
    %v155 = vsel %vm81, %v36, 0
    %v158 = vsel %vm81, %v37, 0
    %v161 = vsel %vm81, %v38, 0
    %v164 = vsel %vm81, %v39, 0
    %v167 = vsel %vm81, %v40, 0
    %v170 = vsel %vm81, %v41, 0
    %v173 = vsel %vm81, %v42, 0
    %v176 = vsel %vm81, %v43, 0
    %v179 = vsel %vm81, %v44, 0
    %v182 = vsel %vm81, %v45, 0
    %v185 = vsel %vm81, %v46, 0
    %v188 = vsel %vm81, %v47, 0
    %v191 = vsel %vm81, %v48, 0
    %v194 = vsel %vm81, %v49, 0
    %v197 = vsel %vm81, %v50, 0
    %v200 = vsel %vm81, %v51, 0
    %v203 = vsel %vm81, %v52, 0
    %v206 = vsel %vm81, %v53, 0
    %v209 = vsel %vm81, %v54, 0
    %v212 = vsel %vm81, %v55, 0
    %v215 = vsel %vm81, %v56, 0
    %v218 = vsel %vm81, %v57, 0
    %v221 = vsel %vm81, %v58, 0
    %v224 = vsel %vm81, %v59, 0
    %v227 = vsel %vm81, %v60, 0
    %v230 = vsel %vm81, %v61, 0
    %v233 = vsel %vm81, %v62, 0
    %v236 = vsel %vm81, %v63, 0
    %v239 = vsel %vm81, %v64, 0
    %v242 = vsel %vm81, %v65, 0
    %v245 = vsel %vm81, %v66, 0
    %v248 = vsel %vm81, %v67, 0
    %v251 = vsel %vm81, %v68, 0
    %v254 = vsel %vm81, %v69, 0
    %v257 = vsel %vm81, %v70, 0
    %v260 = vsel %vm81, %v71, 0
    %v263 = vsel %vm81, %v72, 0
    %v266 = vsel %vm81, %v73, 0
    %v269 = vsel %vm81, %v74, 0
    %v272 = vsel %vm81, %v75, 0
    %vm274 = vcmask 1043456
    %v276 = vsel %vm274, %v80, 0
    %278 = vmatprep.subr.mxu0 0.0
    %279 = vmatpush1.msra.mxu0 %v76
    %280 = vmatprep.subr.mxu0 0.0
    %281 = vmatpush1.msra.mxu0 %v77
    %282 = vmatprep.subr.mxu0 0.0
    %283 = vmatpush1.msra.mxu0 %v78
    %284 = vmatprep.subr.mxu0 0.0
    %285 = vmatpush1.msra.mxu0 %v79
    %286 = vmatprep.subr.mxu0 0.0
    %287 = vmatpush1.msra.mxu0 %v276
    %288 = vmatprep.subr.mxu0 0.0
    %289 = vmatpush1.msra.mxu0 0.0
    %290 = vmatprep.subr.mxu0 0.0
    %291 = vmatpush1.msra.mxu0 0.0
    %292 = vmatprep.subr.mxu0 0.0
    %293 = vmatpush1.msra.mxu0 0.0
    %294 = vmatprep.subr.mxu0 0.0
    %295 = vmatpush1.msra.mxu0 0.0
    %296 = vmatprep.subr.mxu0 0.0
    %297 = vmatpush1.msra.mxu0 0.0
    %298 = vmatprep.subr.mxu0 0.0
    %299 = vmatpush1.msra.mxu0 0.0
    %300 = vmatprep.subr.mxu0 0.0
    %301 = vmatpush1.msra.mxu0 0.0
    %302 = vmatprep.subr.mxu0 0.0
    %303 = vmatpush1.msra.mxu0 0.0
    %304 = vmatprep.subr.mxu0 0.0
    %305 = vmatpush1.msra.mxu0 0.0
    %306 = vmatprep.subr.mxu0 0.0
    %307 = vmatpush1.msra.mxu0 0.0
    %308 = vmatprep.subr.mxu0 0.0
    %309 = vmatpush1.msra.mxu0 0.0
    %310 = vmatprep.subr.mxu0 0.0
    %311 = vmatpush1.msra.mxu0 0.0
    %312 = vmatprep.subr.mxu0 0.0
    %313 = vmatpush1.msra.mxu0 0.0
    %314 = vmatprep.subr.mxu0 0.0
    %315 = vmatpush1.msra.mxu0 0.0
    %316 = vmatprep.subr.mxu0 0.0
    %317 = vmatpush1.msra.mxu0 0.0
    %318 = vmatprep.subr.mxu0 0.0
    %319 = vmatpush1.msra.mxu0 0.0
    %320 = vmatprep.subr.mxu0 0.0
    %321 = vmatpush1.msra.mxu0 0.0
    %322 = vmatprep.subr.mxu0 0.0
    %323 = vmatpush1.msra.mxu0 0.0
    %324 = vmatprep.subr.mxu0 0.0
    %325 = vmatpush1.msra.mxu0 0.0
    %326 = vmatprep.subr.mxu0 0.0
    %327 = vmatpush1.msra.mxu0 0.0
    %328 = vmatprep.subr.mxu0 0.0
    %329 = vmatpush1.msra.mxu0 0.0
    %330 = vmatprep.subr.mxu0 0.0
    %331 = vmatpush1.msra.mxu0 0.0
    %332 = vmatprep.subr.mxu0 0.0
    %333 = vmatpush1.msra.mxu0 0.0
    %334 = vmatprep.subr.mxu0 0.0
    %335 = vmatpush1.msra.mxu0 0.0
    %336 = vmatprep.subr.mxu0 0.0
    %337 = vmatpush1.msra.mxu0 0.0
    %338 = vmatprep.subr.mxu0 0.0
    %339 = vmatpush1.msra.mxu0 0.0
    %340 = vmatprep.subr.mxu0 0.0
    %341 = vmatpush1.msra.mxu0 0.0
    %342 = vmatprep.mubr.f32.mxu0 0.0
    %343 = vmatmul.mubr.f32.gmra.mrb[0].mxu0 %v83
    %v344 = vpop.f32.mrb[0].mxu0
    %v345 = vadd.f32 0.0, %v344
    %v346 = vpop.f32.mrb[0].mxu0
    %347 = vmatprep.mubr.f32.mxu0 0.0
    %348 = vmatmul.mubr.f32.gmra.mrb[0].mxu0 %v86
    %v349 = vpop.f32.mrb[0].mxu0
    %v350 = vadd.f32 0.0, %v349
    %v351 = vpop.f32.mrb[0].mxu0
    %352 = vmatprep.mubr.f32.mxu0 0.0
    %353 = vmatmul.mubr.f32.gmra.mrb[0].mxu0 %v89
    %v354 = vpop.f32.mrb[0].mxu0
    %v355 = vadd.f32 0.0, %v354
    %v356 = vpop.f32.mrb[0].mxu0
    %357 = vmatprep.mubr.f32.mxu0 0.0
    %358 = vmatmul.mubr.f32.gmra.mrb[0].mxu0 %v92
    %v359 = vpop.f32.mrb[0].mxu0
    %v360 = vadd.f32 0.0, %v359
    %v361 = vpop.f32.mrb[0].mxu0
    %362 = vmatprep.mubr.f32.mxu0 0.0
    %363 = vmatmul.mubr.f32.gmra.mrb[0].mxu0 %v95
    %v364 = vpop.f32.mrb[0].mxu0
    %v365 = vadd.f32 0.0, %v364
    %v366 = vpop.f32.mrb[0].mxu0
    %367 = vmatprep.mubr.f32.mxu0 0.0
    %368 = vmatmul.mubr.f32.gmra.mrb[0].mxu0 %v98
    %v369 = vpop.f32.mrb[0].mxu0
    %v370 = vadd.f32 0.0, %v369
    %v371 = vpop.f32.mrb[0].mxu0
    %372 = vmatprep.mubr.f32.mxu0 0.0
    %373 = vmatmul.mubr.f32.gmra.mrb[0].mxu0 %v101
    %v374 = vpop.f32.mrb[0].mxu0
    %v375 = vadd.f32 0.0, %v374
    %v376 = vpop.f32.mrb[0].mxu0
    %377 = vmatprep.mubr.f32.mxu0 0.0
    %378 = vmatmul.mubr.f32.gmra.mrb[0].mxu0 %v104
    %v379 = vpop.f32.mrb[0].mxu0
    %v380 = vadd.f32 0.0, %v379
    %v381 = vpop.f32.mrb[0].mxu0
    %382 = vmatprep.mubr.f32.mxu0 0.0
    %383 = vmatmul.mubr.f32.gmra.mrb[0].mxu0 %v107
    %v384 = vpop.f32.mrb[0].mxu0
    %v385 = vadd.f32 0.0, %v384
    %v386 = vpop.f32.mrb[0].mxu0
    %387 = vmatprep.mubr.f32.mxu0 0.0
    %388 = vmatmul.mubr.f32.gmra.mrb[0].mxu0 %v110
    %v389 = vpop.f32.mrb[0].mxu0
    %v390 = vadd.f32 0.0, %v389
    %v391 = vpop.f32.mrb[0].mxu0
    %392 = vmatprep.mubr.f32.mxu0 0.0
    %393 = vmatmul.mubr.f32.gmra.mrb[0].mxu0 %v113
    %v394 = vpop.f32.mrb[0].mxu0
    %v395 = vadd.f32 0.0, %v394
    %v396 = vpop.f32.mrb[0].mxu0
    %397 = vmatprep.mubr.f32.mxu0 0.0
    %398 = vmatmul.mubr.f32.gmra.mrb[0].mxu0 %v116
    %v399 = vpop.f32.mrb[0].mxu0
    %v400 = vadd.f32 0.0, %v399
    %v401 = vpop.f32.mrb[0].mxu0
    %402 = vmatprep.mubr.f32.mxu0 0.0
    %403 = vmatmul.mubr.f32.gmra.mrb[0].mxu0 %v119
    %v404 = vpop.f32.mrb[0].mxu0
    %v405 = vadd.f32 0.0, %v404
    %v406 = vpop.f32.mrb[0].mxu0
    %407 = vmatprep.mubr.f32.mxu0 0.0
    %408 = vmatmul.mubr.f32.gmra.mrb[0].mxu0 %v122
    %v409 = vpop.f32.mrb[0].mxu0
    %v410 = vadd.f32 0.0, %v409
    %v411 = vpop.f32.mrb[0].mxu0
    %412 = vmatprep.mubr.f32.mxu0 0.0
    %413 = vmatmul.mubr.f32.gmra.mrb[0].mxu0 %v125
    %v414 = vpop.f32.mrb[0].mxu0
    %v415 = vadd.f32 0.0, %v414
    %v416 = vpop.f32.mrb[0].mxu0
    %417 = vmatprep.mubr.f32.mxu0 0.0
    %418 = vmatmul.mubr.f32.gmra.mrb[0].mxu0 %v128
    %v419 = vpop.f32.mrb[0].mxu0
    %v420 = vadd.f32 0.0, %v419
    %v421 = vpop.f32.mrb[0].mxu0
    %422 = vmatprep.mubr.f32.mxu0 0.0
    %423 = vmatmul.mubr.f32.gmra.mrb[0].mxu0 %v131
    %v424 = vpop.f32.mrb[0].mxu0
    %v425 = vadd.f32 0.0, %v424
    %v426 = vpop.f32.mrb[0].mxu0
    %427 = vmatprep.mubr.f32.mxu0 0.0
    %428 = vmatmul.mubr.f32.gmra.mrb[0].mxu0 %v134
    %v429 = vpop.f32.mrb[0].mxu0
    %v430 = vadd.f32 0.0, %v429
    %v431 = vpop.f32.mrb[0].mxu0
    %432 = vmatprep.mubr.f32.mxu0 0.0
    %433 = vmatmul.mubr.f32.gmra.mrb[0].mxu0 %v137
    %v434 = vpop.f32.mrb[0].mxu0
    %v435 = vadd.f32 0.0, %v434
    %v436 = vpop.f32.mrb[0].mxu0
    %437 = vmatprep.mubr.f32.mxu0 0.0
    %438 = vmatmul.mubr.f32.gmra.mrb[0].mxu0 %v140
    %v439 = vpop.f32.mrb[0].mxu0
    %v440 = vadd.f32 0.0, %v439
    %v441 = vpop.f32.mrb[0].mxu0
    %442 = vmatprep.mubr.f32.mxu0 0.0
    %443 = vmatmul.mubr.f32.gmra.mrb[0].mxu0 %v143
    %v444 = vpop.f32.mrb[0].mxu0
    %v445 = vadd.f32 0.0, %v444
    %v446 = vpop.f32.mrb[0].mxu0
    %447 = vmatprep.mubr.f32.mxu0 0.0
    %448 = vmatmul.mubr.f32.gmra.mrb[0].mxu0 %v146
    %v449 = vpop.f32.mrb[0].mxu0
    %v450 = vadd.f32 0.0, %v449
    %v451 = vpop.f32.mrb[0].mxu0
    %452 = vmatprep.mubr.f32.mxu0 0.0
    %453 = vmatmul.mubr.f32.gmra.mrb[0].mxu0 %v149
    %v454 = vpop.f32.mrb[0].mxu0
    %v455 = vadd.f32 0.0, %v454
    %v456 = vpop.f32.mrb[0].mxu0
    %457 = vmatprep.mubr.f32.mxu0 0.0
    %458 = vmatmul.mubr.f32.gmra.mrb[0].mxu0 %v152
    %v459 = vpop.f32.mrb[0].mxu0
    %v460 = vadd.f32 0.0, %v459
    %v461 = vpop.f32.mrb[0].mxu0
    %462 = vmatprep.mubr.f32.mxu0 0.0
    %463 = vmatmul.mubr.f32.gmra.mrb[0].mxu0 %v155
    %v464 = vpop.f32.mrb[0].mxu0
    %v465 = vadd.f32 0.0, %v464
    %v466 = vpop.f32.mrb[0].mxu0
    %467 = vmatprep.mubr.f32.mxu0 0.0
    %468 = vmatmul.mubr.f32.gmra.mrb[0].mxu0 %v158
    %v469 = vpop.f32.mrb[0].mxu0
    %v470 = vadd.f32 0.0, %v469
    %v471 = vpop.f32.mrb[0].mxu0
    %472 = vmatprep.mubr.f32.mxu0 0.0
    %473 = vmatmul.mubr.f32.gmra.mrb[0].mxu0 %v161
    %v474 = vpop.f32.mrb[0].mxu0
    %v475 = vadd.f32 0.0, %v474
    %v476 = vpop.f32.mrb[0].mxu0
    %477 = vmatprep.mubr.f32.mxu0 0.0
    %478 = vmatmul.mubr.f32.gmra.mrb[0].mxu0 %v164
    %v479 = vpop.f32.mrb[0].mxu0
    %v480 = vadd.f32 0.0, %v479
    %v481 = vpop.f32.mrb[0].mxu0
    %482 = vmatprep.mubr.f32.mxu0 0.0
    %483 = vmatmul.mubr.f32.gmra.mrb[0].mxu0 %v167
    %v484 = vpop.f32.mrb[0].mxu0
    %v485 = vadd.f32 0.0, %v484
    %v486 = vpop.f32.mrb[0].mxu0
    %487 = vmatprep.mubr.f32.mxu0 0.0
    %488 = vmatmul.mubr.f32.gmra.mrb[0].mxu0 %v170
    %v489 = vpop.f32.mrb[0].mxu0
    %v490 = vadd.f32 0.0, %v489
    %v491 = vpop.f32.mrb[0].mxu0
    %492 = vmatprep.mubr.f32.mxu0 0.0
    %493 = vmatmul.mubr.f32.gmra.mrb[0].mxu0 %v173
    %v494 = vpop.f32.mrb[0].mxu0
    %v495 = vadd.f32 0.0, %v494
    %v496 = vpop.f32.mrb[0].mxu0
    %497 = vmatprep.mubr.f32.mxu0 0.0
    %498 = vmatmul.mubr.f32.gmra.mrb[0].mxu0 %v176
    %v499 = vpop.f32.mrb[0].mxu0
    %v500 = vadd.f32 0.0, %v499
    %v501 = vpop.f32.mrb[0].mxu0
    %502 = vmatprep.mubr.f32.mxu0 0.0
    %503 = vmatmul.mubr.f32.gmra.mrb[0].mxu0 %v179
    %v504 = vpop.f32.mrb[0].mxu0
    %v505 = vadd.f32 0.0, %v504
    %v506 = vpop.f32.mrb[0].mxu0
    %507 = vmatprep.mubr.f32.mxu0 0.0
    %508 = vmatmul.mubr.f32.gmra.mrb[0].mxu0 %v182
    %v509 = vpop.f32.mrb[0].mxu0
    %v510 = vadd.f32 0.0, %v509
    %v511 = vpop.f32.mrb[0].mxu0
    %512 = vmatprep.mubr.f32.mxu0 0.0
    %513 = vmatmul.mubr.f32.gmra.mrb[0].mxu0 %v185
    %v514 = vpop.f32.mrb[0].mxu0
    %v515 = vadd.f32 0.0, %v514
    %v516 = vpop.f32.mrb[0].mxu0
    %517 = vmatprep.mubr.f32.mxu0 0.0
    %518 = vmatmul.mubr.f32.gmra.mrb[0].mxu0 %v188
    %v519 = vpop.f32.mrb[0].mxu0
    %v520 = vadd.f32 0.0, %v519
    %v521 = vpop.f32.mrb[0].mxu0
    %522 = vmatprep.mubr.f32.mxu0 0.0
    %523 = vmatmul.mubr.f32.gmra.mrb[0].mxu0 %v191
    %v524 = vpop.f32.mrb[0].mxu0
    %v525 = vadd.f32 0.0, %v524
    %v526 = vpop.f32.mrb[0].mxu0
    %527 = vmatprep.mubr.f32.mxu0 0.0
    %528 = vmatmul.mubr.f32.gmra.mrb[0].mxu0 %v194
    %v529 = vpop.f32.mrb[0].mxu0
    %v530 = vadd.f32 0.0, %v529
    %v531 = vpop.f32.mrb[0].mxu0
    %532 = vmatprep.mubr.f32.mxu0 0.0
    %533 = vmatmul.mubr.f32.gmra.mrb[0].mxu0 %v197
    %v534 = vpop.f32.mrb[0].mxu0
    %v535 = vadd.f32 0.0, %v534
    %v536 = vpop.f32.mrb[0].mxu0
    %537 = vmatprep.mubr.f32.mxu0 0.0
    %538 = vmatmul.mubr.f32.gmra.mrb[0].mxu0 %v200
    %v539 = vpop.f32.mrb[0].mxu0
    %v540 = vadd.f32 0.0, %v539
    %v541 = vpop.f32.mrb[0].mxu0
    %542 = vmatprep.mubr.f32.mxu0 0.0
    %543 = vmatmul.mubr.f32.gmra.mrb[0].mxu0 %v203
    %v544 = vpop.f32.mrb[0].mxu0
    %v545 = vadd.f32 0.0, %v544
    %v546 = vpop.f32.mrb[0].mxu0
    %547 = vmatprep.mubr.f32.mxu0 0.0
    %548 = vmatmul.mubr.f32.gmra.mrb[0].mxu0 %v206
    %v549 = vpop.f32.mrb[0].mxu0
    %v550 = vadd.f32 0.0, %v549
    %v551 = vpop.f32.mrb[0].mxu0
    %552 = vmatprep.mubr.f32.mxu0 0.0
    %553 = vmatmul.mubr.f32.gmra.mrb[0].mxu0 %v209
    %v554 = vpop.f32.mrb[0].mxu0
    %v555 = vadd.f32 0.0, %v554
    %v556 = vpop.f32.mrb[0].mxu0
    %557 = vmatprep.mubr.f32.mxu0 0.0
    %558 = vmatmul.mubr.f32.gmra.mrb[0].mxu0 %v212
    %v559 = vpop.f32.mrb[0].mxu0
    %v560 = vadd.f32 0.0, %v559
    %v561 = vpop.f32.mrb[0].mxu0
    %562 = vmatprep.mubr.f32.mxu0 0.0
    %563 = vmatmul.mubr.f32.gmra.mrb[0].mxu0 %v215
    %v564 = vpop.f32.mrb[0].mxu0
    %v565 = vadd.f32 0.0, %v564
    %v566 = vpop.f32.mrb[0].mxu0
    %567 = vmatprep.mubr.f32.mxu0 0.0
    %568 = vmatmul.mubr.f32.gmra.mrb[0].mxu0 %v218
    %v569 = vpop.f32.mrb[0].mxu0
    %v570 = vadd.f32 0.0, %v569
    %v571 = vpop.f32.mrb[0].mxu0
    %572 = vmatprep.mubr.f32.mxu0 0.0
    %573 = vmatmul.mubr.f32.gmra.mrb[0].mxu0 %v221
    %v574 = vpop.f32.mrb[0].mxu0
    %v575 = vadd.f32 0.0, %v574
    %v576 = vpop.f32.mrb[0].mxu0
    %577 = vmatprep.mubr.f32.mxu0 0.0
    %578 = vmatmul.mubr.f32.gmra.mrb[0].mxu0 %v224
    %v579 = vpop.f32.mrb[0].mxu0
    %v580 = vadd.f32 0.0, %v579
    %v581 = vpop.f32.mrb[0].mxu0
    %582 = vmatprep.mubr.f32.mxu0 0.0
    %583 = vmatmul.mubr.f32.gmra.mrb[0].mxu0 %v227
    %v584 = vpop.f32.mrb[0].mxu0
    %v585 = vadd.f32 0.0, %v584
    %v586 = vpop.f32.mrb[0].mxu0
    %587 = vmatprep.mubr.f32.mxu0 0.0
    %588 = vmatmul.mubr.f32.gmra.mrb[0].mxu0 %v230
    %v589 = vpop.f32.mrb[0].mxu0
    %v590 = vadd.f32 0.0, %v589
    %v591 = vpop.f32.mrb[0].mxu0
    %592 = vmatprep.mubr.f32.mxu0 0.0
    %593 = vmatmul.mubr.f32.gmra.mrb[0].mxu0 %v233
    %v594 = vpop.f32.mrb[0].mxu0
    %v595 = vadd.f32 0.0, %v594
    %v596 = vpop.f32.mrb[0].mxu0
    %597 = vmatprep.mubr.f32.mxu0 0.0
    %598 = vmatmul.mubr.f32.gmra.mrb[0].mxu0 %v236
    %v599 = vpop.f32.mrb[0].mxu0
    %v600 = vadd.f32 0.0, %v599
    %v601 = vpop.f32.mrb[0].mxu0
    %602 = vmatprep.mubr.f32.mxu0 0.0
    %603 = vmatmul.mubr.f32.gmra.mrb[0].mxu0 %v239
    %v604 = vpop.f32.mrb[0].mxu0
    %v605 = vadd.f32 0.0, %v604
    %v606 = vpop.f32.mrb[0].mxu0
    %607 = vmatprep.mubr.f32.mxu0 0.0
    %608 = vmatmul.mubr.f32.gmra.mrb[0].mxu0 %v242
    %v609 = vpop.f32.mrb[0].mxu0
    %v610 = vadd.f32 0.0, %v609
    %v611 = vpop.f32.mrb[0].mxu0
    %612 = vmatprep.mubr.f32.mxu0 0.0
    %613 = vmatmul.mubr.f32.gmra.mrb[0].mxu0 %v245
    %v614 = vpop.f32.mrb[0].mxu0
    %v615 = vadd.f32 0.0, %v614
    %v616 = vpop.f32.mrb[0].mxu0
    %617 = vmatprep.mubr.f32.mxu0 0.0
    %618 = vmatmul.mubr.f32.gmra.mrb[0].mxu0 %v248
    %v619 = vpop.f32.mrb[0].mxu0
    %v620 = vadd.f32 0.0, %v619
    %v621 = vpop.f32.mrb[0].mxu0
    %622 = vmatprep.mubr.f32.mxu0 0.0
    %623 = vmatmul.mubr.f32.gmra.mrb[0].mxu0 %v251
    %v624 = vpop.f32.mrb[0].mxu0
    %v625 = vadd.f32 0.0, %v624
    %v626 = vpop.f32.mrb[0].mxu0
    %627 = vmatprep.mubr.f32.mxu0 0.0
    %628 = vmatmul.mubr.f32.gmra.mrb[0].mxu0 %v254
    %v629 = vpop.f32.mrb[0].mxu0
    %v630 = vadd.f32 0.0, %v629
    %v631 = vpop.f32.mrb[0].mxu0
    %632 = vmatprep.mubr.f32.mxu0 0.0
    %633 = vmatmul.mubr.f32.gmra.mrb[0].mxu0 %v257
    %v634 = vpop.f32.mrb[0].mxu0
    %v635 = vadd.f32 0.0, %v634
    %v636 = vpop.f32.mrb[0].mxu0
    %637 = vmatprep.mubr.f32.mxu0 0.0
    %638 = vmatmul.mubr.f32.gmra.mrb[0].mxu0 %v260
    %v639 = vpop.f32.mrb[0].mxu0
    %v640 = vadd.f32 0.0, %v639
    %v641 = vpop.f32.mrb[0].mxu0
    %642 = vmatprep.mubr.f32.mxu0 0.0
    %643 = vmatmul.mubr.f32.gmra.mrb[0].mxu0 %v263
    %v644 = vpop.f32.mrb[0].mxu0
    %v645 = vadd.f32 0.0, %v644
    %v646 = vpop.f32.mrb[0].mxu0
    %647 = vmatprep.mubr.f32.mxu0 0.0
    %648 = vmatmul.mubr.f32.gmra.mrb[0].mxu0 %v266
    %v649 = vpop.f32.mrb[0].mxu0
    %v650 = vadd.f32 0.0, %v649
    %v651 = vpop.f32.mrb[0].mxu0
    %652 = vmatprep.mubr.f32.mxu0 0.0
    %653 = vmatmul.mubr.f32.gmra.mrb[0].mxu0 %v269
    %v654 = vpop.f32.mrb[0].mxu0
    %v655 = vadd.f32 0.0, %v654
    %v656 = vpop.f32.mrb[0].mxu0
    %657 = vmatprep.mubr.f32.mxu0 0.0
    %658 = vmatmul.mubr.f32.gmra.mrb[0].mxu0 %v272
    %v659 = vpop.f32.mrb[0].mxu0
    %v660 = vadd.f32 0.0, %v659
    %v661 = vpop.f32.mrb[0].mxu0
    %662 = vdwg.mxu0
    %vm663 = vcmask 64512
    %v664 = vsel %vm663, %v345, 0.0
    %v665 = vsel %vm663, %v350, 0.0
    %v666 = vadd.f32 %v664, %v665
    %v667 = vsel %vm663, %v355, 0.0
    %v668 = vadd.f32 %v666, %v667
    %v669 = vsel %vm663, %v360, 0.0
    %v670 = vadd.f32 %v668, %v669
    %v671 = vsel %vm663, %v365, 0.0
    %v672 = vadd.f32 %v670, %v671
    %v673 = vsel %vm663, %v370, 0.0
    %v674 = vadd.f32 %v672, %v673
    %v675 = vsel %vm663, %v375, 0.0
    %v676 = vadd.f32 %v674, %v675
    %v677 = vsel %vm663, %v380, 0.0
    %v678 = vadd.f32 %v676, %v677
    %v679 = vsel %vm663, %v385, 0.0
    %v680 = vadd.f32 %v678, %v679
    %v681 = vsel %vm663, %v390, 0.0
    %v682 = vadd.f32 %v680, %v681
    %v683 = vsel %vm663, %v395, 0.0
    %v684 = vadd.f32 %v682, %v683
    %v685 = vsel %vm663, %v400, 0.0
    %v686 = vadd.f32 %v684, %v685
    %v687 = vsel %vm663, %v405, 0.0
    %v688 = vadd.f32 %v686, %v687
    %v689 = vsel %vm663, %v410, 0.0
    %v690 = vadd.f32 %v688, %v689
    %v691 = vsel %vm663, %v415, 0.0
    %v692 = vadd.f32 %v690, %v691
    %v693 = vsel %vm663, %v420, 0.0
    %v694 = vadd.f32 %v692, %v693
    %v695 = vsel %vm663, %v425, 0.0
    %v696 = vadd.f32 %v694, %v695
    %v697 = vsel %vm663, %v430, 0.0
    %v698 = vadd.f32 %v696, %v697
    %v699 = vsel %vm663, %v435, 0.0
    %v700 = vadd.f32 %v698, %v699
    %v701 = vsel %vm663, %v440, 0.0
    %v702 = vadd.f32 %v700, %v701
    %v703 = vsel %vm663, %v445, 0.0
    %v704 = vadd.f32 %v702, %v703
    %v705 = vsel %vm663, %v450, 0.0
    %v706 = vadd.f32 %v704, %v705
    %v707 = vsel %vm663, %v455, 0.0
    %v708 = vadd.f32 %v706, %v707
    %v709 = vsel %vm663, %v460, 0.0
    %v710 = vadd.f32 %v708, %v709
    %v711 = vsel %vm663, %v465, 0.0
    %v712 = vadd.f32 %v710, %v711
    %v713 = vsel %vm663, %v470, 0.0
    %v714 = vadd.f32 %v712, %v713
    %v715 = vsel %vm663, %v475, 0.0
    %v716 = vadd.f32 %v714, %v715
    %v717 = vsel %vm663, %v480, 0.0
    %v718 = vadd.f32 %v716, %v717
    %v719 = vsel %vm663, %v485, 0.0
    %v720 = vadd.f32 %v718, %v719
    %v721 = vsel %vm663, %v490, 0.0
    %v722 = vadd.f32 %v720, %v721
    %v723 = vsel %vm663, %v495, 0.0
    %v724 = vadd.f32 %v722, %v723
    %v725 = vsel %vm663, %v500, 0.0
    %v726 = vadd.f32 %v724, %v725
    %v727 = vsel %vm663, %v505, 0.0
    %v728 = vadd.f32 %v726, %v727
    %v729 = vsel %vm663, %v510, 0.0
    %v730 = vadd.f32 %v728, %v729
    %v731 = vsel %vm663, %v515, 0.0
    %v732 = vadd.f32 %v730, %v731
    %v733 = vsel %vm663, %v520, 0.0
    %v734 = vadd.f32 %v732, %v733
    %v735 = vsel %vm663, %v525, 0.0
    %v736 = vadd.f32 %v734, %v735
    %v737 = vsel %vm663, %v530, 0.0
    %v738 = vadd.f32 %v736, %v737
    %v739 = vsel %vm663, %v535, 0.0
    %v740 = vadd.f32 %v738, %v739
    %v741 = vsel %vm663, %v540, 0.0
    %v742 = vadd.f32 %v740, %v741
    %v743 = vsel %vm663, %v545, 0.0
    %v744 = vadd.f32 %v742, %v743
    %v745 = vsel %vm663, %v550, 0.0
    %v746 = vadd.f32 %v744, %v745
    %v747 = vsel %vm663, %v555, 0.0
    %v748 = vadd.f32 %v746, %v747
    %v749 = vsel %vm663, %v560, 0.0
    %v750 = vadd.f32 %v748, %v749
    %v751 = vsel %vm663, %v565, 0.0
    %v752 = vadd.f32 %v750, %v751
    %v753 = vsel %vm663, %v570, 0.0
    %v754 = vadd.f32 %v752, %v753
    %v755 = vsel %vm663, %v575, 0.0
    %v756 = vadd.f32 %v754, %v755
    %v757 = vsel %vm663, %v580, 0.0
    %v758 = vadd.f32 %v756, %v757
    %v759 = vsel %vm663, %v585, 0.0
    %v760 = vadd.f32 %v758, %v759
    %v761 = vsel %vm663, %v590, 0.0
    %v762 = vadd.f32 %v760, %v761
    %v763 = vsel %vm663, %v595, 0.0
    %v764 = vadd.f32 %v762, %v763
    %v765 = vsel %vm663, %v600, 0.0
    %v766 = vadd.f32 %v764, %v765
    %v767 = vsel %vm663, %v605, 0.0
    %v768 = vadd.f32 %v766, %v767
    %v769 = vsel %vm663, %v610, 0.0
    %v770 = vadd.f32 %v768, %v769
    %v771 = vsel %vm663, %v615, 0.0
    %v772 = vadd.f32 %v770, %v771
    %v773 = vsel %vm663, %v620, 0.0
    %v774 = vadd.f32 %v772, %v773
    %v775 = vsel %vm663, %v625, 0.0
    %v776 = vadd.f32 %v774, %v775
    %v777 = vsel %vm663, %v630, 0.0
    %v778 = vadd.f32 %v776, %v777
    %v779 = vsel %vm663, %v635, 0.0
    %v780 = vadd.f32 %v778, %v779
    %v781 = vsel %vm663, %v640, 0.0
    %v782 = vadd.f32 %v780, %v781
    %v783 = vsel %vm663, %v645, 0.0
    %v784 = vadd.f32 %v782, %v783
    %v785 = vsel %vm663, %v650, 0.0
    %v786 = vadd.f32 %v784, %v785
    %v787 = vsel %vm663, %v655, 0.0
    %v788 = vadd.f32 %v786, %v787
    %v789 = vsel %vm663, %v660, 0.0
    %v790 = vadd.f32 %v788, %v789
    %v791 = vrot.slane %v790, 4
    %v792 = vadd.f32 %v790, %v791
    %v793 = vrot.slane %v792, 2
    %v794 = vadd.f32 %v792, %v793
    %v795 = vrot.slane %v794, 1
    %v796 = vadd.f32 %v794, %v795
    %vm797 = vcmask 57344
    %798 = vst.msk [vmem:[#allocation2] sm:$0x1] %vm797, %v796
    %v799 = vmul.f32 %v345, %v345
    %v800 = vmul.f32 %v350, %v350
    %v801 = vmul.f32 %v355, %v355
    %v802 = vmul.f32 %v360, %v360
    %v803 = vmul.f32 %v365, %v365
    %v804 = vmul.f32 %v370, %v370
    %v805 = vmul.f32 %v375, %v375
    %v806 = vmul.f32 %v380, %v380
    %v807 = vmul.f32 %v385, %v385
    %v808 = vmul.f32 %v390, %v390
    %v809 = vmul.f32 %v395, %v395
    %v810 = vmul.f32 %v400, %v400
    %v811 = vmul.f32 %v405, %v405
    %v812 = vmul.f32 %v410, %v410
    %v813 = vmul.f32 %v415, %v415
    %v814 = vmul.f32 %v420, %v420
    %v815 = vmul.f32 %v425, %v425
    %v816 = vmul.f32 %v430, %v430
    %v817 = vmul.f32 %v435, %v435
    %v818 = vmul.f32 %v440, %v440
    %v819 = vmul.f32 %v445, %v445
    %v820 = vmul.f32 %v450, %v450
    %v821 = vmul.f32 %v455, %v455
    %v822 = vmul.f32 %v460, %v460
    %v823 = vmul.f32 %v465, %v465
    %v824 = vmul.f32 %v470, %v470
    %v825 = vmul.f32 %v475, %v475
    %v826 = vmul.f32 %v480, %v480
    %v827 = vmul.f32 %v485, %v485
    %v828 = vmul.f32 %v490, %v490
    %v829 = vmul.f32 %v495, %v495
    %v830 = vmul.f32 %v500, %v500
    %v831 = vmul.f32 %v505, %v505
    %v832 = vmul.f32 %v510, %v510
    %v833 = vmul.f32 %v515, %v515
    %v834 = vmul.f32 %v520, %v520
    %v835 = vmul.f32 %v525, %v525
    %v836 = vmul.f32 %v530, %v530
    %v837 = vmul.f32 %v535, %v535
    %v838 = vmul.f32 %v540, %v540
    %v839 = vmul.f32 %v545, %v545
    %v840 = vmul.f32 %v550, %v550
    %v841 = vmul.f32 %v555, %v555
    %v842 = vmul.f32 %v560, %v560
    %v843 = vmul.f32 %v565, %v565
    %v844 = vmul.f32 %v570, %v570
    %v845 = vmul.f32 %v575, %v575
    %v846 = vmul.f32 %v580, %v580
    %v847 = vmul.f32 %v585, %v585
    %v848 = vmul.f32 %v590, %v590
    %v849 = vmul.f32 %v595, %v595
    %v850 = vmul.f32 %v600, %v600
    %v851 = vmul.f32 %v605, %v605
    %v852 = vmul.f32 %v610, %v610
    %v853 = vmul.f32 %v615, %v615
    %v854 = vmul.f32 %v620, %v620
    %v855 = vmul.f32 %v625, %v625
    %v856 = vmul.f32 %v630, %v630
    %v857 = vmul.f32 %v635, %v635
    %v858 = vmul.f32 %v640, %v640
    %v859 = vmul.f32 %v645, %v645
    %v860 = vmul.f32 %v650, %v650
    %v861 = vmul.f32 %v655, %v655
    %v862 = vmul.f32 %v660, %v660
    %v863 = vsel %vm663, %v799, 0.0
    %v864 = vsel %vm663, %v800, 0.0
    %v865 = vadd.f32 %v863, %v864
    %v866 = vsel %vm663, %v801, 0.0
    %v867 = vadd.f32 %v865, %v866
    %v868 = vsel %vm663, %v802, 0.0
    %v869 = vadd.f32 %v867, %v868
    %v870 = vsel %vm663, %v803, 0.0
    %v871 = vadd.f32 %v869, %v870
    %v872 = vsel %vm663, %v804, 0.0
    %v873 = vadd.f32 %v871, %v872
    %v874 = vsel %vm663, %v805, 0.0
    %v875 = vadd.f32 %v873, %v874
    %v876 = vsel %vm663, %v806, 0.0
    %v877 = vadd.f32 %v875, %v876
    %v878 = vsel %vm663, %v807, 0.0
    %v879 = vadd.f32 %v877, %v878
    %v880 = vsel %vm663, %v808, 0.0
    %v881 = vadd.f32 %v879, %v880
    %v882 = vsel %vm663, %v809, 0.0
    %v883 = vadd.f32 %v881, %v882
    %v884 = vsel %vm663, %v810, 0.0
    %v885 = vadd.f32 %v883, %v884
    %v886 = vsel %vm663, %v811, 0.0
    %v887 = vadd.f32 %v885, %v886
    %v888 = vsel %vm663, %v812, 0.0
    %v889 = vadd.f32 %v887, %v888
    %v890 = vsel %vm663, %v813, 0.0
    %v891 = vadd.f32 %v889, %v890
    %v892 = vsel %vm663, %v814, 0.0
    %v893 = vadd.f32 %v891, %v892
    %v894 = vsel %vm663, %v815, 0.0
    %v895 = vadd.f32 %v893, %v894
    %v896 = vsel %vm663, %v816, 0.0
    %v897 = vadd.f32 %v895, %v896
    %v898 = vsel %vm663, %v817, 0.0
    %v899 = vadd.f32 %v897, %v898
    %v900 = vsel %vm663, %v818, 0.0
    %v901 = vadd.f32 %v899, %v900
    %v902 = vsel %vm663, %v819, 0.0
    %v903 = vadd.f32 %v901, %v902
    %v904 = vsel %vm663, %v820, 0.0
    %v905 = vadd.f32 %v903, %v904
    %v906 = vsel %vm663, %v821, 0.0
    %v907 = vadd.f32 %v905, %v906
    %v908 = vsel %vm663, %v822, 0.0
    %v909 = vadd.f32 %v907, %v908
    %v910 = vsel %vm663, %v823, 0.0
    %v911 = vadd.f32 %v909, %v910
    %v912 = vsel %vm663, %v824, 0.0
    %v913 = vadd.f32 %v911, %v912
    %v914 = vsel %vm663, %v825, 0.0
    %v915 = vadd.f32 %v913, %v914
    %v916 = vsel %vm663, %v826, 0.0
    %v917 = vadd.f32 %v915, %v916
    %v918 = vsel %vm663, %v827, 0.0
    %v919 = vadd.f32 %v917, %v918
    %v920 = vsel %vm663, %v828, 0.0
    %v921 = vadd.f32 %v919, %v920
    %v922 = vsel %vm663, %v829, 0.0
    %v923 = vadd.f32 %v921, %v922
    %v924 = vsel %vm663, %v830, 0.0
    %v925 = vadd.f32 %v923, %v924
    %v926 = vsel %vm663, %v831, 0.0
    %v927 = vadd.f32 %v925, %v926
    %v928 = vsel %vm663, %v832, 0.0
    %v929 = vadd.f32 %v927, %v928
    %v930 = vsel %vm663, %v833, 0.0
    %v931 = vadd.f32 %v929, %v930
    %v932 = vsel %vm663, %v834, 0.0
    %v933 = vadd.f32 %v931, %v932
    %v934 = vsel %vm663, %v835, 0.0
    %v935 = vadd.f32 %v933, %v934
    %v936 = vsel %vm663, %v836, 0.0
    %v937 = vadd.f32 %v935, %v936
    %v938 = vsel %vm663, %v837, 0.0
    %v939 = vadd.f32 %v937, %v938
    %v940 = vsel %vm663, %v838, 0.0
    %v941 = vadd.f32 %v939, %v940
    %v942 = vsel %vm663, %v839, 0.0
    %v943 = vadd.f32 %v941, %v942
    %v944 = vsel %vm663, %v840, 0.0
    %v945 = vadd.f32 %v943, %v944
    %v946 = vsel %vm663, %v841, 0.0
    %v947 = vadd.f32 %v945, %v946
    %v948 = vsel %vm663, %v842, 0.0
    %v949 = vadd.f32 %v947, %v948
    %v950 = vsel %vm663, %v843, 0.0
    %v951 = vadd.f32 %v949, %v950
    %v952 = vsel %vm663, %v844, 0.0
    %v953 = vadd.f32 %v951, %v952
    %v954 = vsel %vm663, %v845, 0.0
    %v955 = vadd.f32 %v953, %v954
    %v956 = vsel %vm663, %v846, 0.0
    %v957 = vadd.f32 %v955, %v956
    %v958 = vsel %vm663, %v847, 0.0
    %v959 = vadd.f32 %v957, %v958
    %v960 = vsel %vm663, %v848, 0.0
    %v961 = vadd.f32 %v959, %v960
    %v962 = vsel %vm663, %v849, 0.0
    %v963 = vadd.f32 %v961, %v962
    %v964 = vsel %vm663, %v850, 0.0
    %v965 = vadd.f32 %v963, %v964
    %v966 = vsel %vm663, %v851, 0.0
    %v967 = vadd.f32 %v965, %v966
    %v968 = vsel %vm663, %v852, 0.0
    %v969 = vadd.f32 %v967, %v968
    %v970 = vsel %vm663, %v853, 0.0
    %v971 = vadd.f32 %v969, %v970
    %v972 = vsel %vm663, %v854, 0.0
    %v973 = vadd.f32 %v971, %v972
    %v974 = vsel %vm663, %v855, 0.0
    %v975 = vadd.f32 %v973, %v974
    %v976 = vsel %vm663, %v856, 0.0
    %v977 = vadd.f32 %v975, %v976
    %v978 = vsel %vm663, %v857, 0.0
    %v979 = vadd.f32 %v977, %v978
    %v980 = vsel %vm663, %v858, 0.0
    %v981 = vadd.f32 %v979, %v980
    %v982 = vsel %vm663, %v859, 0.0
    %v983 = vadd.f32 %v981, %v982
    %v984 = vsel %vm663, %v860, 0.0
    %v985 = vadd.f32 %v983, %v984
    %v986 = vsel %vm663, %v861, 0.0
    %v987 = vadd.f32 %v985, %v986
    %v988 = vsel %vm663, %v862, 0.0
    %v989 = vadd.f32 %v987, %v988
    %v990 = vrot.slane %v989, 4
    %v991 = vadd.f32 %v989, %v990
    %v992 = vrot.slane %v991, 2
    %v993 = vadd.f32 %v991, %v992
    %v994 = vrot.slane %v993, 1
    %v995 = vadd.f32 %v993, %v994
    %996 = vst.msk [vmem:[#allocation2 + $0x1] sm:$0x1] %vm797, %v995
    // Predicated region
    $region10: #{tpu_custom_call.1} parent=1 // pred_check
      _
    $region11: #{tpu_custom_call.1} parent=1 // pred_check_branch
      %998 = sbr.rel (0) target = $region13
    $region12: #{tpu_custom_call.1} parent=1 // pred_region
      %s1000 = ssub.s32 32, 32
      %1001 = vsyncadd [#allocation3], %s1000
      %s1003 = sshll.u32 [#allocation2], 4
      %s1004 = int_to_ptr.vmem [resolvable:$true] %s1003
      %1006 = dma.vmem_to_hbm [thread:$0]  %s1004, 32, %s2, [#allocation3]
    $region13: #{tpu_custom_call.1} parent=1 // pred_fallthru
      _
    // Predicated region
    $region14: #{tpu_custom_call.1} parent=1 // pred_check
      _
    $region15: #{tpu_custom_call.1} parent=1 // pred_check_branch
      %1008 = sbr.rel (0) target = $region17
    $region16: #{tpu_custom_call.1} parent=1 // pred_region
      %1009 = dma.done [#allocation3], 32
    $region17: #{tpu_custom_call.1} parent=1 // pred_fallthru
      _
    %1010 = vsyncpa [#allocation3], 1

</llo_original>
